<compile_context>
chip_gen: v5e
topology: v5e:2x2
jax: 0.10.0
libtpu: 0.0.40
codegen_flags: <defaults>
</compile_context>

<pallas_src>
import functools

import jax
import jax.numpy as jnp
from jax.experimental import pallas as pl
from jax.experimental.pallas import tpu as pltpu


# ----------------------------------------------------------------------------- activations
def _fast_mish(x):
    """Mish(x) = x * tanh(softplus(x)) with a single exp.

    tanh(log(1 + e^x)) = ((1+e^x)^2 - 1) / ((1+e^x)^2 + 1), so one EUP exp plus an
    approximate reciprocal suffices. For x > 20, mish(x) == x to f32 precision; the
    jnp.minimum keeps the unused branch of the where from overflowing exp into NaN/Inf.
    NOTE: pl.reciprocal(approx=True) is not bit-faithful to PyTorch's exact Mish
    (~1e-3-scale relative error compounding over 3 layers).
    """
    t = jnp.exp(jnp.minimum(x, 20.0))
    s = (1.0 + t) * (1.0 + t)
    y = x * (s - 1.0) * pl.reciprocal(s + 1.0, approx=True)
    return jnp.where(x > 20.0, x, y)


def _exact_mish(x):
    return x * jnp.tanh(jax.nn.softplus(x))


# ----------------------------------------------------------------------------- kernel
def obs_predictor_kernel(
    x_ref,              # (TB, in_dim)      concatenated [state, action]
    w1_ref, b1_ref,     # (in_dim, H), (1, H)
    w2_ref, b2_ref,     # (H, H),      (1, H)
    w3_ref, b3_ref,     # (H, H),      (1, H)
    wh_ref, bh_ref,     # fused+padded head: (H, head_pad), (1, head_pad)
    out_ref,            # (TB, head_pad)  cols [0:state_dim]=next_state, col state_dim=reward
    *, dot_dtype, compute_dtype,
):
    x = x_ref[...].astype(dot_dtype)

    h = jnp.dot(x, w1_ref[...], preferred_element_type=jnp.float32)
    h = _fast_mish(h.astype(compute_dtype) + b1_ref[...])

    h = jnp.dot(h.astype(dot_dtype), w2_ref[...], preferred_element_type=jnp.float32)
    h = _fast_mish(h.astype(compute_dtype) + b2_ref[...])

    h = jnp.dot(h.astype(dot_dtype), w3_ref[...], preferred_element_type=jnp.float32)
    h = _fast_mish(h.astype(compute_dtype) + b3_ref[...])

    # fused obs + reward head, lane-dense (head_pad is a multiple of 128)
    head = (jnp.dot(h.astype(dot_dtype), wh_ref[...], preferred_element_type=jnp.float32)
            + bh_ref[...])
    out_ref[...] = head.astype(out_ref.dtype)


# ----------------------------------------------------------------------------- param prep (one-time)
def prepare_params(params, state_dim, *, dot_dtype=jnp.bfloat16,
                   compute_dtype=jnp.float32):
    """One-time formatting of parameters for the kernel. Do NOT call per forward.

    Weights are stored (in_features, out_features) so y = x @ W + b matches
    nn.Linear(x) = x @ W.T + b exactly. The obs/reward heads are fused and lane-padded
    to a multiple of 128 so the kernel's stores are unmasked/lane-dense.
    """
    H = params["w1"].shape[1]
    head_dim = state_dim + 1
    head_pad = ((head_dim + 127) // 128) * 128

    wh = jnp.concatenate([params["wo"], params["wr"]], axis=1)
    wh = jnp.pad(wh, ((0, 0), (0, head_pad - head_dim)))
    bh = jnp.concatenate([params["bo"], params["br"]], axis=1)
    bh = jnp.pad(bh, ((0, 0), (0, head_pad - head_dim)))

    prepared = dict(
        w1=params["w1"].astype(dot_dtype), b1=params["b1"].astype(compute_dtype),
        w2=params["w2"].astype(dot_dtype), b2=params["b2"].astype(compute_dtype),
        w3=params["w3"].astype(dot_dtype), b3=params["b3"].astype(compute_dtype),
        wh=wh.astype(dot_dtype), bh=bh.astype(jnp.float32),
        state_dim=state_dim, hidden=H, head_pad=head_pad,
        dot_dtype=dot_dtype, compute_dtype=compute_dtype,
    )
    return prepared


def _pick_tile(B, tb):
    """Batch tile: big enough to amortize grid-step overhead, but >=2 grid steps for
    large B so the v7x second TensorCore gets work (dimension_semantics='parallel')."""
    if B <= 128:
        return min(tb, B)                      # single tile for small batches
    half = -(-(-(-B // 2)) // 8) * 8           # round_up(ceil(B/2), 8)
    tb_eff = min(tb, half)
    return max(8, (tb_eff // 8) * 8)


# ----------------------------------------------------------------------------- forward
def obs_predictor_forward(state, action, prepared, *, tb=512, vmem_limit_bytes=None):
    """state: (B, state_dim), action: (B, act_dim), prepared = prepare_params(...)
       -> (next_state (B, state_dim), next_reward (B, 1))."""
    B, state_dim = state.shape
    _, act_dim = action.shape
    assert state_dim == prepared["state_dim"]
    H = prepared["hidden"]
    head_pad = prepared["head_pad"]
    in_dim = state_dim + act_dim

    # single tiny activation input (layer-1 K=24 matmul in one MXU push)
    x = jnp.concatenate([state, action], axis=-1)

    # batch tiling: pad B up to a tile multiple
    tb_eff = _pick_tile(B, tb)
    if tb_eff < B:
        assert tb_eff % 8 == 0
    b_pad = -(-B // tb_eff) * tb_eff
    if b_pad != B:
        x = jnp.pad(x, ((0, b_pad - B), (0, 0)))

    grid = (b_pad // tb_eff,)
    full = lambda shape: pl.BlockSpec(shape, lambda i: (0, 0))
    kernel = functools.partial(
        obs_predictor_kernel,
        dot_dtype=prepared["dot_dtype"],
        compute_dtype=prepared["compute_dtype"],
    )

    out = pl.pallas_call(
        kernel,
        out_shape=jax.ShapeDtypeStruct((b_pad, head_pad), jnp.float32),
        grid_spec=pltpu.PrefetchScalarGridSpec(
            num_scalar_prefetch=0,
            grid=grid,
            in_specs=[
                pl.BlockSpec((tb_eff, in_dim), lambda i: (i, 0)),
                full((in_dim, H)), full((1, H)),
                full((H, H)), full((1, H)),
                full((H, H)), full((1, H)),
                full((H, head_pad)), full((1, head_pad)),
            ],
            out_specs=pl.BlockSpec((tb_eff, head_pad), lambda i: (i, 0)),
        ),
        compiler_params=pltpu.CompilerParams(
            dimension_semantics=("parallel",),     # independent batch tiles (megacore OK)
            vmem_limit_bytes=vmem_limit_bytes,     # only needed for very large tb
        ),
    )(
        x,
        prepared["w1"], prepared["b1"],
        prepared["w2"], prepared["b2"],
        prepared["w3"], prepared["b3"],
        prepared["wh"], prepared["bh"],
    )

    next_state = out[:B, :state_dim]
    # reward clamp is done here on the (B,1) slice (fuses into the slice; keeps the
    # kernel free of the per-column mask over the full (TB, 128) tile).
    next_reward = jnp.clip(out[:B, state_dim:state_dim + 1], 0.0, 1.0)
    return next_state, next_reward


# ----------------------------------------------------------------------------- test harness
def init_params(key, state_dim, act_dim, hidden_dim=256):
    """Deterministic synthetic parameters (same shapes/init as the PyTorch module)."""
    in_dim = state_dim + act_dim
    keys = jax.random.split(key, 10)

    def lin(kw, kb, fan_in, fan_out):
        bound = 1.0 / jnp.sqrt(fan_in)
        w = jax.random.uniform(kw, (fan_in, fan_out), jnp.float32, -bound, bound)
        b = jax.random.uniform(kb, (1, fan_out), jnp.float32, -bound, bound)
        return w, b

    w1, b1 = lin(keys[0], keys[1], in_dim, hidden_dim)
    w2, b2 = lin(keys[2], keys[3], hidden_dim, hidden_dim)
    w3, b3 = lin(keys[4], keys[5], hidden_dim, hidden_dim)
    wo, bo = lin(keys[6], keys[7], hidden_dim, state_dim)
    wr, br = lin(keys[8], keys[9], hidden_dim, 1)
    return dict(w1=w1, b1=b1, w2=w2, b2=b2, w3=w3, b3=b3, wo=wo, bo=bo, wr=wr, br=br)


def reference_forward(state, action, params):
    """Pure-JAX f32 reference of the PyTorch forward (exact Mish)."""
    x = jnp.concatenate([state, action], axis=-1)
    h = _exact_mish(x @ params["w1"] + params["b1"])
    h = _exact_mish(h @ params["w2"] + params["b2"])
    h = _exact_mish(h @ params["w3"] + params["b3"])
    ns = h @ params["wo"] + params["bo"]
    nr = jnp.clip(h @ params["wr"] + params["br"], 0.0, 1.0)
    return ns, nr


if __name__ == "__main__":
    B, state_dim, act_dim, hidden = 16, 16, 8, 256

    key = jax.random.PRNGKey(0)
    k_state, k_action, k_params, k_s2, k_a2 = jax.random.split(key, 5)

    state = jax.random.normal(k_state, (B, state_dim), jnp.float32)
    action = jax.random.normal(k_action, (B, act_dim), jnp.float32)
    params = init_params(k_params, state_dim, act_dim, hidden)
    ref_state, ref_reward = reference_forward(state, action, params)

    # ---- f32-MXU path: tight tolerance vs the exact-Mish f32 reference ----
    prep_f32 = prepare_params(params, state_dim, dot_dtype=jnp.float32)
    ns_f32, nr_f32 = obs_predictor_forward(state, action, prep_f32)
    ns_f32 = jax.block_until_ready(ns_f32)
    nr_f32 = jax.block_until_ready(nr_f32)
    assert ns_f32.shape == (B, state_dim) and nr_f32.shape == (B, 1)
    assert jnp.allclose(ns_f32, ref_state, atol=5e-3, rtol=5e-3)
    assert jnp.allclose(nr_f32, ref_reward, atol=5e-3, rtol=5e-3)
    assert float(nr_f32.min()) >= 0.0 and float(nr_f32.max()) <= 1.0

    # ---- default bf16-MXU path (prep done once, outside the call path) ----
    prep_bf16 = prepare_params(params, state_dim)          # dot_dtype=bf16 default
    next_state, next_reward = obs_predictor_forward(state, action, prep_bf16)
    next_state = jax.block_until_ready(next_state)
    next_reward = jax.block_until_ready(next_reward)
    assert next_state.shape == (B, state_dim)
    assert next_reward.shape == (B, 1)
    assert jnp.allclose(next_state, ref_state, atol=3e-2, rtol=3e-2)
    assert jnp.allclose(next_reward, ref_reward, atol=3e-2, rtol=3e-2)
    assert float(next_reward.min()) >= 0.0 and float(next_reward.max()) <= 1.0

    # ---- tiled path: B > 128 and not a tile multiple (padding + grid of 2 tiles) ----
    B2 = 200
    state2 = jax.random.normal(k_s2, (B2, state_dim), jnp.float32)
    action2 = jax.random.normal(k_a2, (B2, act_dim), jnp.float32)
    ns2, nr2 = obs_predictor_forward(state2, action2, prep_bf16)
    ns2 = jax.block_until_ready(ns2)
    nr2 = jax.block_until_ready(nr2)
    ref_ns2, ref_nr2 = reference_forward(state2, action2, params)
    assert ns2.shape == (B2, state_dim) and nr2.shape == (B2, 1)
    assert jnp.allclose(ns2, ref_ns2, atol=3e-2, rtol=3e-2)
    assert jnp.allclose(nr2, ref_nr2, atol=3e-2, rtol=3e-2)
    assert float(nr2.min()) >= 0.0 and float(nr2.max()) <= 1.0

    print("KERNEL_OK")
</pallas_src>

<mosaic_0001>
module attributes {stable_mosaic.version = 11 : i64} {
  func.func @obs_predictor_kernel(%arg0: i32, %arg1: memref<16x24xf32, #tpu.memory_space<vmem>>, %arg2: memref<24x256xf32, #tpu.memory_space<vmem>>, %arg3: memref<1x256xf32, #tpu.memory_space<vmem>>, %arg4: memref<256x256xf32, #tpu.memory_space<vmem>>, %arg5: memref<1x256xf32, #tpu.memory_space<vmem>>, %arg6: memref<256x256xf32, #tpu.memory_space<vmem>>, %arg7: memref<1x256xf32, #tpu.memory_space<vmem>>, %arg8: memref<256x128xf32, #tpu.memory_space<vmem>>, %arg9: memref<1x128xf32, #tpu.memory_space<vmem>>, %arg10: memref<16x128xf32, #tpu.memory_space<vmem>>) attributes {dimension_semantics = [#tpu.dimension_semantics<parallel>], iteration_bounds = array<i64: 1>, scalar_prefetch = 0 : i64, scratch_operands = 0 : i64, tpu.core_type = #tpu.core_type<tc>, window_params = [{transform_indices = @transform_0, window_bounds = array<i64: 16, 24>}, {pipeline_mode = #tpu.pipeline_mode<synchronous>, transform_indices = @transform_1, window_bounds = array<i64: 24, 256>}, {pipeline_mode = #tpu.pipeline_mode<synchronous>, transform_indices = @transform_2, window_bounds = array<i64: 1, 256>}, {pipeline_mode = #tpu.pipeline_mode<synchronous>, transform_indices = @transform_3, window_bounds = array<i64: 256, 256>}, {pipeline_mode = #tpu.pipeline_mode<synchronous>, transform_indices = @transform_4, window_bounds = array<i64: 1, 256>}, {pipeline_mode = #tpu.pipeline_mode<synchronous>, transform_indices = @transform_5, window_bounds = array<i64: 256, 256>}, {pipeline_mode = #tpu.pipeline_mode<synchronous>, transform_indices = @transform_6, window_bounds = array<i64: 1, 256>}, {pipeline_mode = #tpu.pipeline_mode<synchronous>, transform_indices = @transform_7, window_bounds = array<i64: 256, 128>}, {pipeline_mode = #tpu.pipeline_mode<synchronous>, transform_indices = @transform_8, window_bounds = array<i64: 1, 128>}, {transform_indices = @transform_9, window_bounds = array<i64: 16, 128>}]} {
    %c0 = arith.constant 0 : index
    %c0_0 = arith.constant 0 : index
    %0 = vector.load %arg1[%c0, %c0_0] : memref<16x24xf32, #tpu.memory_space<vmem>>, vector<16x24xf32>
    %c0_1 = arith.constant 0 : index
    %c0_2 = arith.constant 0 : index
    %1 = vector.load %arg2[%c0_1, %c0_2] : memref<24x256xf32, #tpu.memory_space<vmem>>, vector<24x256xf32>
    %cst = arith.constant dense<0.000000e+00> : vector<16x256xf32>
    %2 = tpu.matmul %0, %1, %cst {dimension_numbers = #tpu.dot_dimension_numbers<[1], [0], [0], [1], [0, 0, 1, 1], [], []>} : vector<16x24xf32>, vector<24x256xf32>, vector<16x256xf32> -> vector<16x256xf32>
    %c0_3 = arith.constant 0 : index
    %c0_4 = arith.constant 0 : index
    %3 = vector.load %arg3[%c0_3, %c0_4] : memref<1x256xf32, #tpu.memory_space<vmem>>, vector<1x256xf32>
    %4 = vector.broadcast %3 : vector<1x256xf32> to vector<16x256xf32>
    %5 = arith.addf %2, %4 : vector<16x256xf32>
    %cst_5 = arith.constant 2.000000e+01 : f32
    %6 = vector.broadcast %cst_5 : f32 to vector<16x256xf32>
    %7 = arith.minimumf %5, %6 : vector<16x256xf32>
    %8 = math.exp %7 : vector<16x256xf32>
    %cst_6 = arith.constant 1.000000e+00 : f32
    %9 = vector.broadcast %cst_6 : f32 to vector<16x256xf32>
    %10 = arith.addf %9, %8 : vector<16x256xf32>
    %cst_7 = arith.constant 1.000000e+00 : f32
    %11 = vector.broadcast %cst_7 : f32 to vector<16x256xf32>
    %12 = arith.addf %11, %8 : vector<16x256xf32>
    %13 = arith.mulf %10, %12 : vector<16x256xf32>
    %cst_8 = arith.constant 1.000000e+00 : f32
    %14 = vector.broadcast %cst_8 : f32 to vector<16x256xf32>
    %15 = arith.subf %13, %14 : vector<16x256xf32>
    %16 = arith.mulf %5, %15 : vector<16x256xf32>
    %cst_9 = arith.constant 1.000000e+00 : f32
    %17 = vector.broadcast %cst_9 : f32 to vector<16x256xf32>
    %18 = arith.addf %13, %17 : vector<16x256xf32>
    %19 = tpu.reciprocal %18 {approx = true} : vector<16x256xf32> -> vector<16x256xf32>
    %20 = arith.mulf %16, %19 : vector<16x256xf32>
    %cst_10 = arith.constant 2.000000e+01 : f32
    %21 = vector.broadcast %cst_10 : f32 to vector<16x256xf32>
    %22 = arith.cmpf ogt, %5, %21 : vector<16x256xf32>
    %23 = arith.select %22, %5, %20 : vector<16x256xi1>, vector<16x256xf32>
    %c0_11 = arith.constant 0 : index
    %c0_12 = arith.constant 0 : index
    %24 = vector.load %arg4[%c0_11, %c0_12] : memref<256x256xf32, #tpu.memory_space<vmem>>, vector<256x256xf32>
    %cst_13 = arith.constant dense<0.000000e+00> : vector<16x256xf32>
    %25 = tpu.matmul %23, %24, %cst_13 {dimension_numbers = #tpu.dot_dimension_numbers<[1], [0], [0], [1], [0, 0, 1, 1], [], []>} : vector<16x256xf32>, vector<256x256xf32>, vector<16x256xf32> -> vector<16x256xf32>
    %c0_14 = arith.constant 0 : index
    %c0_15 = arith.constant 0 : index
    %26 = vector.load %arg5[%c0_14, %c0_15] : memref<1x256xf32, #tpu.memory_space<vmem>>, vector<1x256xf32>
    %27 = vector.broadcast %26 : vector<1x256xf32> to vector<16x256xf32>
    %28 = arith.addf %25, %27 : vector<16x256xf32>
    %cst_16 = arith.constant 2.000000e+01 : f32
    %29 = vector.broadcast %cst_16 : f32 to vector<16x256xf32>
    %30 = arith.minimumf %28, %29 : vector<16x256xf32>
    %31 = math.exp %30 : vector<16x256xf32>
    %cst_17 = arith.constant 1.000000e+00 : f32
    %32 = vector.broadcast %cst_17 : f32 to vector<16x256xf32>
    %33 = arith.addf %32, %31 : vector<16x256xf32>
    %cst_18 = arith.constant 1.000000e+00 : f32
    %34 = vector.broadcast %cst_18 : f32 to vector<16x256xf32>
    %35 = arith.addf %34, %31 : vector<16x256xf32>
    %36 = arith.mulf %33, %35 : vector<16x256xf32>
    %cst_19 = arith.constant 1.000000e+00 : f32
    %37 = vector.broadcast %cst_19 : f32 to vector<16x256xf32>
    %38 = arith.subf %36, %37 : vector<16x256xf32>
    %39 = arith.mulf %28, %38 : vector<16x256xf32>
    %cst_20 = arith.constant 1.000000e+00 : f32
    %40 = vector.broadcast %cst_20 : f32 to vector<16x256xf32>
    %41 = arith.addf %36, %40 : vector<16x256xf32>
    %42 = tpu.reciprocal %41 {approx = true} : vector<16x256xf32> -> vector<16x256xf32>
    %43 = arith.mulf %39, %42 : vector<16x256xf32>
    %cst_21 = arith.constant 2.000000e+01 : f32
    %44 = vector.broadcast %cst_21 : f32 to vector<16x256xf32>
    %45 = arith.cmpf ogt, %28, %44 : vector<16x256xf32>
    %46 = arith.select %45, %28, %43 : vector<16x256xi1>, vector<16x256xf32>
    %c0_22 = arith.constant 0 : index
    %c0_23 = arith.constant 0 : index
    %47 = vector.load %arg6[%c0_22, %c0_23] : memref<256x256xf32, #tpu.memory_space<vmem>>, vector<256x256xf32>
    %cst_24 = arith.constant dense<0.000000e+00> : vector<16x256xf32>
    %48 = tpu.matmul %46, %47, %cst_24 {dimension_numbers = #tpu.dot_dimension_numbers<[1], [0], [0], [1], [0, 0, 1, 1], [], []>} : vector<16x256xf32>, vector<256x256xf32>, vector<16x256xf32> -> vector<16x256xf32>
    %c0_25 = arith.constant 0 : index
    %c0_26 = arith.constant 0 : index
    %49 = vector.load %arg7[%c0_25, %c0_26] : memref<1x256xf32, #tpu.memory_space<vmem>>, vector<1x256xf32>
    %50 = vector.broadcast %49 : vector<1x256xf32> to vector<16x256xf32>
    %51 = arith.addf %48, %50 : vector<16x256xf32>
    %cst_27 = arith.constant 2.000000e+01 : f32
    %52 = vector.broadcast %cst_27 : f32 to vector<16x256xf32>
    %53 = arith.minimumf %51, %52 : vector<16x256xf32>
    %54 = math.exp %53 : vector<16x256xf32>
    %cst_28 = arith.constant 1.000000e+00 : f32
    %55 = vector.broadcast %cst_28 : f32 to vector<16x256xf32>
    %56 = arith.addf %55, %54 : vector<16x256xf32>
    %cst_29 = arith.constant 1.000000e+00 : f32
    %57 = vector.broadcast %cst_29 : f32 to vector<16x256xf32>
    %58 = arith.addf %57, %54 : vector<16x256xf32>
    %59 = arith.mulf %56, %58 : vector<16x256xf32>
    %cst_30 = arith.constant 1.000000e+00 : f32
    %60 = vector.broadcast %cst_30 : f32 to vector<16x256xf32>
    %61 = arith.subf %59, %60 : vector<16x256xf32>
    %62 = arith.mulf %51, %61 : vector<16x256xf32>
    %cst_31 = arith.constant 1.000000e+00 : f32
    %63 = vector.broadcast %cst_31 : f32 to vector<16x256xf32>
    %64 = arith.addf %59, %63 : vector<16x256xf32>
    %65 = tpu.reciprocal %64 {approx = true} : vector<16x256xf32> -> vector<16x256xf32>
    %66 = arith.mulf %62, %65 : vector<16x256xf32>
    %cst_32 = arith.constant 2.000000e+01 : f32
    %67 = vector.broadcast %cst_32 : f32 to vector<16x256xf32>
    %68 = arith.cmpf ogt, %51, %67 : vector<16x256xf32>
    %69 = arith.select %68, %51, %66 : vector<16x256xi1>, vector<16x256xf32>
    %c0_33 = arith.constant 0 : index
    %c0_34 = arith.constant 0 : index
    %70 = vector.load %arg8[%c0_33, %c0_34] : memref<256x128xf32, #tpu.memory_space<vmem>>, vector<256x128xf32>
    %cst_35 = arith.constant dense<0.000000e+00> : vector<16x128xf32>
    %71 = tpu.matmul %69, %70, %cst_35 {dimension_numbers = #tpu.dot_dimension_numbers<[1], [0], [0], [1], [0, 0, 1, 1], [], []>} : vector<16x256xf32>, vector<256x128xf32>, vector<16x128xf32> -> vector<16x128xf32>
    %c0_36 = arith.constant 0 : index
    %c0_37 = arith.constant 0 : index
    %72 = vector.load %arg9[%c0_36, %c0_37] : memref<1x128xf32, #tpu.memory_space<vmem>>, vector<1x128xf32>
    %73 = vector.broadcast %72 : vector<1x128xf32> to vector<16x128xf32>
    %74 = arith.addf %71, %73 : vector<16x128xf32>
    %c0_38 = arith.constant 0 : index
    %c0_39 = arith.constant 0 : index
    %75 = vector.load %arg10[%c0_38, %c0_39] : memref<16x128xf32, #tpu.memory_space<vmem>>, vector<16x128xf32>
    tpu.vector_store %arg10[%c0_38, %c0_39], %74 {strides = array<i32>} : memref<16x128xf32, #tpu.memory_space<vmem>>, vector<16x128xf32>,
    return
  }
  func.func @transform_0(%arg0: i32) -> (i32, i32) {
    %c0_i32 = arith.constant 0 : i32
    %c0_i32_0 = arith.constant 0 : i32
    return %arg0, %c0_i32 : i32, i32
  }
  func.func @transform_1(%arg0: i32) -> (i32, i32) {
    %c0_i32 = arith.constant 0 : i32
    %c0_i32_0 = arith.constant 0 : i32
    %c0_i32_1 = arith.constant 0 : i32
    return %c0_i32, %c0_i32_0 : i32, i32
  }
  func.func @transform_2(%arg0: i32) -> (i32, i32) {
    %c0_i32 = arith.constant 0 : i32
    %c0_i32_0 = arith.constant 0 : i32
    %c0_i32_1 = arith.constant 0 : i32
    return %c0_i32, %c0_i32_0 : i32, i32
  }
  func.func @transform_3(%arg0: i32) -> (i32, i32) {
    %c0_i32 = arith.constant 0 : i32
    %c0_i32_0 = arith.constant 0 : i32
    %c0_i32_1 = arith.constant 0 : i32
    return %c0_i32, %c0_i32_0 : i32, i32
  }
  func.func @transform_4(%arg0: i32) -> (i32, i32) {
    %c0_i32 = arith.constant 0 : i32
    %c0_i32_0 = arith.constant 0 : i32
    %c0_i32_1 = arith.constant 0 : i32
    return %c0_i32, %c0_i32_0 : i32, i32
  }
  func.func @transform_5(%arg0: i32) -> (i32, i32) {
    %c0_i32 = arith.constant 0 : i32
    %c0_i32_0 = arith.constant 0 : i32
    %c0_i32_1 = arith.constant 0 : i32
    return %c0_i32, %c0_i32_0 : i32, i32
  }
  func.func @transform_6(%arg0: i32) -> (i32, i32) {
    %c0_i32 = arith.constant 0 : i32
    %c0_i32_0 = arith.constant 0 : i32
    %c0_i32_1 = arith.constant 0 : i32
    return %c0_i32, %c0_i32_0 : i32, i32
  }
  func.func @transform_7(%arg0: i32) -> (i32, i32) {
    %c0_i32 = arith.constant 0 : i32
    %c0_i32_0 = arith.constant 0 : i32
    %c0_i32_1 = arith.constant 0 : i32
    return %c0_i32, %c0_i32_0 : i32, i32
  }
  func.func @transform_8(%arg0: i32) -> (i32, i32) {
    %c0_i32 = arith.constant 0 : i32
    %c0_i32_0 = arith.constant 0 : i32
    %c0_i32_1 = arith.constant 0 : i32
    return %c0_i32, %c0_i32_0 : i32, i32
  }
  func.func @transform_9(%arg0: i32) -> (i32, i32) {
    %c0_i32 = arith.constant 0 : i32
    %c0_i32_0 = arith.constant 0 : i32
    return %arg0, %c0_i32 : i32, i32
  }
}

</mosaic_0001>

<llo_original>
// kernel: tpu_custom_call.1
$region0: #{tpu_custom_call.1}
  #allocation0 [shape = 'u32[]', space=smem, size = 0x4, offset = 0x4, fixed_abs, tag = 'smem constant byte address 0x4 - core index']
  #allocation1 [shape = 'u32[72,128]{1,0:T(1,128)}', space=vmem, size = 0x9000, scoped, tag = 'internal scratch']
  %s0 = inlined_call_operand.hbm [shape: f32[16,24], index: 0, kind: input, shape index: {}]
  %s1 = inlined_call_operand.hbm [shape: f32[24,256], index: 1, kind: input, shape index: {}]
  %s2 = inlined_call_operand.hbm [shape: f32[1,256], index: 2, kind: input, shape index: {}]
  %s3 = inlined_call_operand.hbm [shape: f32[256,256], index: 3, kind: input, shape index: {}]
  %s4 = inlined_call_operand.vmem [shape: f32[1,256], index: 4, kind: input, shape index: {}]
  %s5 = inlined_call_operand.hbm [shape: f32[256,256], index: 5, kind: input, shape index: {}]
  %s6 = inlined_call_operand.vmem [shape: f32[1,256], index: 6, kind: input, shape index: {}]
  %s7 = inlined_call_operand.hbm [shape: f32[256,128], index: 7, kind: input, shape index: {}]
  %s8 = inlined_call_operand.vmem [shape: f32[1,128], index: 8, kind: input, shape index: {}]
  %s9 = inlined_call_operand.hbm [shape: f32[16,128], index: 9, kind: output, shape index: {}]
  %s10 = sld [smem:[#allocation0]]
  $region70: #{tpu_custom_call.1} parent=0
    _
  %s12 = ssub.s32 1, %s10
  %s13 = scalar_select 0, %s12, %s10
  $region1: #{tpu_custom_call.1} parent=0
    #allocation2 [shape = 'u8[8192]{0}', space=vmem, size = 0x2000, scoped, tag = 'input window, operand 0, single buffered']
    #allocation3 [shape = 's32[1]{0}', space=sflag, size = 0x4, scoped, tag = 'scoped memory for tpu_custom_call.1']
    #allocation4 [shape = 's32[1]{0}', space=sflag, size = 0x4, scoped, tag = 'scoped memory for tpu_custom_call.1']
    #allocation5 [shape = 'u8[24576]{0}', space=vmem, size = 0x6000, scoped, tag = 'input window, operand 1, single buffered']
    #allocation6 [shape = 's32[1]{0}', space=sflag, size = 0x4, scoped, tag = 'scoped memory for tpu_custom_call.1']
    #allocation7 [shape = 'u8[1024]{0}', space=vmem, size = 0x400, scoped, tag = 'input window, operand 2, single buffered']
    #allocation8 [shape = 'u8[262144]{0}', space=vmem, size = 0x40000, scoped, tag = 'input window, operand 3, single buffered']
    #allocation9 [shape = 's32[1]{0}', space=sflag, size = 0x4, scoped, tag = 'scoped memory for tpu_custom_call.1']
    #allocation10 [shape = 'u8[262144]{0}', space=vmem, size = 0x40000, scoped, tag = 'input window, operand 5, single buffered']
    #allocation11 [shape = 'u8[131072]{0}', space=vmem, size = 0x20000, scoped, tag = 'input window, operand 7, single buffered']
    #allocation12 [shape = 's32[1]{0}', space=sflag, size = 0x4, scoped, tag = 'scoped memory for tpu_custom_call.1']
    #allocation13 [shape = 'u8[8192]{0}', space=vmem, size = 0x2000, scoped, tag = 'output window, operand 0, single buffered']
    %14 = vsyncpa [#allocation3], 0
    %15 = vsyncpa [#allocation6], 0
    %16 = vsyncpa [#allocation9], 0
    %17 = vsyncpa [#allocation12], 0
    %18 = vsyncpa [#allocation4], 0
    // Predicated region
    $region2: #{tpu_custom_call.1} parent=1 // pred_check
      _
    $region3: #{tpu_custom_call.1} parent=1 // pred_check_branch
      %20 = sbr.rel (0) target = $region5
    $region4: #{tpu_custom_call.1} parent=1 // pred_region
      %22 = vsyncadd [#allocation3], 0
      %s23 = sshll.u32 %s0, 4
      %s24 = int_to_ptr.hbm [resolvable:$true] %s23
      %s25 = sshll.u32 [#allocation2], 4
      %s26 = int_to_ptr.vmem [resolvable:$true] %s25
      %31 = dma.hbm_to_vmem [thread:$0]  %s24, 256, %s26, [#allocation3], 128, 128, 8
    $region5: #{tpu_custom_call.1} parent=1 // pred_fallthru
      _
    // Predicated region
    $region6: #{tpu_custom_call.1} parent=1 // pred_check
      _
    $region7: #{tpu_custom_call.1} parent=1 // pred_check_branch
      %33 = sbr.rel (0) target = $region9
    $region8: #{tpu_custom_call.1} parent=1 // pred_region
      %35 = vsyncadd [#allocation6], 0
      %s36 = sshll.u32 %s1, 4
      %s37 = int_to_ptr.hbm [resolvable:$true] %s36
      %s38 = sshll.u32 [#allocation5], 4
      %s39 = int_to_ptr.vmem [resolvable:$true] %s38
      %44 = dma.hbm_to_vmem [thread:$0]  %s37, 768, %s39, [#allocation6], 256, 256, 16
    $region9: #{tpu_custom_call.1} parent=1 // pred_fallthru
      _
    // Predicated region
    $region10: #{tpu_custom_call.1} parent=1 // pred_check
      _
    $region11: #{tpu_custom_call.1} parent=1 // pred_check_branch
      %46 = sbr.rel (0) target = $region13
    $region12: #{tpu_custom_call.1} parent=1 // pred_region
      %48 = vsyncadd [#allocation6], 0
      %s50 = sshll.u32 %s2, 4
      %s51 = int_to_ptr.hbm [resolvable:$true] %s50
      %s52 = sshll.u32 [#allocation7], 4
      %s53 = int_to_ptr.vmem [resolvable:$true] %s52
      %55 = dma.hbm_to_vmem [thread:$0]  %s51, 32, %s53, [#allocation6]
    $region13: #{tpu_custom_call.1} parent=1 // pred_fallthru
      _
    // Predicated region
    $region14: #{tpu_custom_call.1} parent=1 // pred_check
      _
    $region15: #{tpu_custom_call.1} parent=1 // pred_check_branch
      %57 = sbr.rel (0) target = $region17
    $region16: #{tpu_custom_call.1} parent=1 // pred_region
      %59 = vsyncadd [#allocation9], 0
      %s60 = sshll.u32 %s3, 4
      %s61 = int_to_ptr.hbm [resolvable:$true] %s60
      %s62 = sshll.u32 [#allocation8], 4
      %s63 = int_to_ptr.vmem [resolvable:$true] %s62
      %68 = dma.hbm_to_vmem [thread:$0]  %s61, 8192, %s63, [#allocation9], 256, 256, 16
    $region17: #{tpu_custom_call.1} parent=1 // pred_fallthru
      _
    // Predicated region
    $region18: #{tpu_custom_call.1} parent=1 // pred_check
      _
    $region19: #{tpu_custom_call.1} parent=1 // pred_check_branch
      %70 = sbr.rel (0) target = $region21
    $region20: #{tpu_custom_call.1} parent=1 // pred_region
      _
    $region21: #{tpu_custom_call.1} parent=1 // pred_fallthru
      _
    // Predicated region
    $region22: #{tpu_custom_call.1} parent=1 // pred_check
      _
    $region23: #{tpu_custom_call.1} parent=1 // pred_check_branch
      %72 = sbr.rel (0) target = $region25
    $region24: #{tpu_custom_call.1} parent=1 // pred_region
      %74 = vsyncadd [#allocation9], 0
      %s75 = sshll.u32 %s5, 4
      %s76 = int_to_ptr.hbm [resolvable:$true] %s75
      %s77 = sshll.u32 [#allocation10], 4
      %s78 = int_to_ptr.vmem [resolvable:$true] %s77
      %83 = dma.hbm_to_vmem [thread:$0]  %s76, 8192, %s78, [#allocation9], 256, 256, 16
    $region25: #{tpu_custom_call.1} parent=1 // pred_fallthru
      _
    // Predicated region
    $region26: #{tpu_custom_call.1} parent=1 // pred_check
      _
    $region27: #{tpu_custom_call.1} parent=1 // pred_check_branch
      %85 = sbr.rel (0) target = $region29
    $region28: #{tpu_custom_call.1} parent=1 // pred_region
      _
    $region29: #{tpu_custom_call.1} parent=1 // pred_fallthru
      _
    // Predicated region
    $region30: #{tpu_custom_call.1} parent=1 // pred_check
      _
    $region31: #{tpu_custom_call.1} parent=1 // pred_check_branch
      %87 = sbr.rel (0) target = $region33
    $region32: #{tpu_custom_call.1} parent=1 // pred_region
      %89 = vsyncadd [#allocation12], 0
      %s90 = sshll.u32 %s7, 4
      %s91 = int_to_ptr.hbm [resolvable:$true] %s90
      %s92 = sshll.u32 [#allocation11], 4
      %s93 = int_to_ptr.vmem [resolvable:$true] %s92
      %98 = dma.hbm_to_vmem [thread:$0]  %s91, 4096, %s93, [#allocation12], 128, 128, 8
    $region33: #{tpu_custom_call.1} parent=1 // pred_fallthru
      _
    // Predicated region
    $region34: #{tpu_custom_call.1} parent=1 // pred_check
      _
    $region35: #{tpu_custom_call.1} parent=1 // pred_check_branch
      %100 = sbr.rel (0) target = $region37
    $region36: #{tpu_custom_call.1} parent=1 // pred_region
      _
    $region37: #{tpu_custom_call.1} parent=1 // pred_fallthru
      _
    // Predicated region
    $region38: #{tpu_custom_call.1} parent=1 // pred_check
      _
    $region39: #{tpu_custom_call.1} parent=1 // pred_check_branch
      %102 = sbr.rel (0) target = $region41
    $region40: #{tpu_custom_call.1} parent=1 // pred_region
      %104 = dma.done [#allocation3], 256
    $region41: #{tpu_custom_call.1} parent=1 // pred_fallthru
      _
    // Predicated region
    $region42: #{tpu_custom_call.1} parent=1 // pred_check
      _
    $region43: #{tpu_custom_call.1} parent=1 // pred_check_branch
      %106 = sbr.rel (0) target = $region45
    $region44: #{tpu_custom_call.1} parent=1 // pred_region
      %108 = dma.done [#allocation6], 768
    $region45: #{tpu_custom_call.1} parent=1 // pred_fallthru
      _
    // Predicated region
    $region46: #{tpu_custom_call.1} parent=1 // pred_check
      _
    $region47: #{tpu_custom_call.1} parent=1 // pred_check_branch
      %110 = sbr.rel (0) target = $region49
    $region48: #{tpu_custom_call.1} parent=1 // pred_region
      %112 = dma.done [#allocation6], 32
    $region49: #{tpu_custom_call.1} parent=1 // pred_fallthru
      _
    // Predicated region
    $region50: #{tpu_custom_call.1} parent=1 // pred_check
      _
    $region51: #{tpu_custom_call.1} parent=1 // pred_check_branch
      %114 = sbr.rel (0) target = $region53
    $region52: #{tpu_custom_call.1} parent=1 // pred_region
      %116 = dma.done [#allocation9], 8192
    $region53: #{tpu_custom_call.1} parent=1 // pred_fallthru
      _
    // Predicated region
    $region54: #{tpu_custom_call.1} parent=1 // pred_check
      _
    $region55: #{tpu_custom_call.1} parent=1 // pred_check_branch
      %118 = sbr.rel (0) target = $region57
    $region56: #{tpu_custom_call.1} parent=1 // pred_region
      %120 = dma.done [#allocation9], 8192
    $region57: #{tpu_custom_call.1} parent=1 // pred_fallthru
      _
    // Predicated region
    $region58: #{tpu_custom_call.1} parent=1 // pred_check
      _
    $region59: #{tpu_custom_call.1} parent=1 // pred_check_branch
      %122 = sbr.rel (0) target = $region61
    $region60: #{tpu_custom_call.1} parent=1 // pred_region
      %124 = dma.done [#allocation12], 4096
    $region61: #{tpu_custom_call.1} parent=1 // pred_fallthru
      _
    %v125 = vld [vmem:[#allocation2] sm:$0xff]
    %v126 = vld [vmem:[#allocation2 + $0x8] sm:$0xff]
    %v127 = vld [vmem:[#allocation5] sm:$0xff]
    %v128 = vld [vmem:[#allocation5 + $0x8] sm:$0xff]
    %v129 = vld [vmem:[#allocation5 + $0x10] sm:$0xff]
    %v130 = vld [vmem:[#allocation5 + $0x18] sm:$0xff]
    %v131 = vld [vmem:[#allocation5 + $0x20] sm:$0xff]
    %v132 = vld [vmem:[#allocation5 + $0x28] sm:$0xff]
    %v133 = vld [vmem:[#allocation7] sm:$0x3]
    %v135 = vperm.slane %v133, 0
    %v136 = vperm.slane %v133, 1
    %vm139 = vcmask 195584
    %v141 = vsel %vm139, %v125, 0
    %v144 = vsel %vm139, %v126, 0
    %146 = vmatpush.msra.mxu0 0.0
    %147 = vmatpush.msra.mxu0 0.0
    %148 = vmatpush.msra.mxu0 0.0
    %149 = vmatpush.msra.mxu0 0.0
    %150 = vmatpush.msra.mxu0 0.0
    %151 = vmatpush.msra.mxu0 0.0
    %152 = vmatpush.msra.mxu0 0.0
    %153 = vmatpush.msra.mxu0 0.0
    %154 = vmatpush.msra.mxu0 0.0
    %155 = vmatpush.msra.mxu0 0.0
    %156 = vmatpush.msra.mxu0 0.0
    %157 = vmatpush.msra.mxu0 0.0
    %158 = vmatpush.msra.mxu0 0.0
    %159 = vmatpush.msra.mxu0 %v131
    %160 = vmatpush.msra.mxu0 %v129
    %161 = vmatpush.msra.mxu0 %v127
    %162 = vmatmul.f32.gmra.mxu0 %v141
    %v163 = vpop.f32.mrf.mxu0
    %v164 = vadd.f32 %v135, %v163
    %165 = vmatmul.f32.gmra.mxu0 %v144
    %v166 = vpop.f32.mrf.mxu0
    %v167 = vadd.f32 %v135, %v166
    %168 = vdwg.mxu0
    %169 = vmatpush.msra.mxu0 0.0
    %170 = vmatpush.msra.mxu0 0.0
    %171 = vmatpush.msra.mxu0 0.0
    %172 = vmatpush.msra.mxu0 0.0
    %173 = vmatpush.msra.mxu0 0.0
    %174 = vmatpush.msra.mxu0 0.0
    %175 = vmatpush.msra.mxu0 0.0
    %176 = vmatpush.msra.mxu0 0.0
    %177 = vmatpush.msra.mxu0 0.0
    %178 = vmatpush.msra.mxu0 0.0
    %179 = vmatpush.msra.mxu0 0.0
    %180 = vmatpush.msra.mxu0 0.0
    %181 = vmatpush.msra.mxu0 0.0
    %182 = vmatpush.msra.mxu0 %v132
    %183 = vmatpush.msra.mxu0 %v130
    %184 = vmatpush.msra.mxu0 %v128
    %185 = vmatmul.f32.gmra.mxu0 %v141
    %v186 = vpop.f32.mrf.mxu0
    %v187 = vadd.f32 %v136, %v186
    %188 = vmatmul.f32.gmra.mxu0 %v144
    %v189 = vpop.f32.mrf.mxu0
    %v190 = vadd.f32 %v136, %v189
    %191 = vdwg.mxu0
    %v192 = vmin.f32 %v164, 20.0
    %v193 = vmin.f32 %v187, 20.0
    %v194 = vmin.f32 %v167, 20.0
    %v195 = vmin.f32 %v190, 20.0
    %v196 = vmul.f32 %v192, 1.442695
    %v197 = vpow.pop %v196
    %v198 = vmul.f32 %v193, 1.442695
    %v199 = vpow.pop %v198
    %v200 = vmul.f32 %v194, 1.442695
    %v201 = vpow.pop %v200
    %v202 = vmul.f32 %v195, 1.442695
    %v203 = vpow.pop %v202
    %v204 = vadd.f32 %v197, 1.0
    %v205 = vadd.f32 %v199, 1.0
    %v206 = vadd.f32 %v201, 1.0
    %v207 = vadd.f32 %v203, 1.0
    %v208 = vmul.f32 %v204, %v204
    %v209 = vmul.f32 %v205, %v205
    %v210 = vmul.f32 %v206, %v206
    %v211 = vmul.f32 %v207, %v207
    %v212 = vsub.f32 %v208, 1.0
    %v213 = vsub.f32 %v209, 1.0
    %v214 = vsub.f32 %v210, 1.0
    %v215 = vsub.f32 %v211, 1.0
    %v216 = vmul.f32 %v164, %v212
    %v217 = vmul.f32 %v187, %v213
    %v218 = vmul.f32 %v167, %v214
    %v219 = vmul.f32 %v190, %v215
    %v220 = vadd.f32 %v208, 1.0
    %v221 = vadd.f32 %v209, 1.0
    %v222 = vadd.f32 %v210, 1.0
    %v223 = vadd.f32 %v211, 1.0
    %v224 = vrcp.pop %v220
    %v225 = vrcp.pop %v221
    %v226 = vrcp.pop %v222
    %v227 = vrcp.pop %v223
    %v228 = vmul.f32 %v216, %v224
    %v229 = vmul.f32 %v217, %v225
    %v230 = vmul.f32 %v218, %v226
    %v231 = vmul.f32 %v219, %v227
    %vm232 = vcmp.gt.f32.partialorder %v164, 20.0
    %vm233 = vcmp.gt.f32.partialorder %v187, 20.0
    %vm234 = vcmp.gt.f32.partialorder %v167, 20.0
    %vm235 = vcmp.gt.f32.partialorder %v190, 20.0
    %v236 = vsel %vm232, %v164, %v228
    %v237 = vsel %vm233, %v187, %v229
    %v238 = vsel %vm234, %v167, %v230
    %v239 = vsel %vm235, %v190, %v231
    %v240 = vld [vmem:[#allocation8] sm:$0xff]
    %v241 = vld [vmem:[#allocation8 + $0x8] sm:$0xff]
    %v242 = vld [vmem:[#allocation8 + $0x10] sm:$0xff]
    %v243 = vld [vmem:[#allocation8 + $0x18] sm:$0xff]
    %v244 = vld [vmem:[#allocation8 + $0x20] sm:$0xff]
    %v245 = vld [vmem:[#allocation8 + $0x28] sm:$0xff]
    %v246 = vld [vmem:[#allocation8 + $0x30] sm:$0xff]
    %v247 = vld [vmem:[#allocation8 + $0x38] sm:$0xff]
    %v248 = vld [vmem:[#allocation8 + $0x40] sm:$0xff]
    %v249 = vld [vmem:[#allocation8 + $0x48] sm:$0xff]
    %v250 = vld [vmem:[#allocation8 + $0x50] sm:$0xff]
    %v251 = vld [vmem:[#allocation8 + $0x58] sm:$0xff]
    %v252 = vld [vmem:[#allocation8 + $0x60] sm:$0xff]
    %v253 = vld [vmem:[#allocation8 + $0x68] sm:$0xff]
    %v254 = vld [vmem:[#allocation8 + $0x70] sm:$0xff]
    %v255 = vld [vmem:[#allocation8 + $0x78] sm:$0xff]
    %v256 = vld [vmem:[#allocation8 + $0x80] sm:$0xff]
    %v257 = vld [vmem:[#allocation8 + $0x88] sm:$0xff]
    %v258 = vld [vmem:[#allocation8 + $0x90] sm:$0xff]
    %v259 = vld [vmem:[#allocation8 + $0x98] sm:$0xff]
    %v260 = vld [vmem:[#allocation8 + $0xa0] sm:$0xff]
    %v261 = vld [vmem:[#allocation8 + $0xa8] sm:$0xff]
    %v262 = vld [vmem:[#allocation8 + $0xb0] sm:$0xff]
    %v263 = vld [vmem:[#allocation8 + $0xb8] sm:$0xff]
    %v264 = vld [vmem:[#allocation8 + $0xc0] sm:$0xff]
    %v265 = vld [vmem:[#allocation8 + $0xc8] sm:$0xff]
    %v266 = vld [vmem:[#allocation8 + $0xd0] sm:$0xff]
    %v267 = vld [vmem:[#allocation8 + $0xd8] sm:$0xff]
    %v268 = vld [vmem:[#allocation8 + $0xe0] sm:$0xff]
    %v269 = vld [vmem:[#allocation8 + $0xe8] sm:$0xff]
    %v270 = vld [vmem:[#allocation8 + $0xf0] sm:$0xff]
    %v271 = vld [vmem:[#allocation8 + $0xf8] sm:$0xff]
    %v272 = vld [vmem:[#allocation8 + $0x100] sm:$0xff]
    %v273 = vld [vmem:[#allocation8 + $0x108] sm:$0xff]
    %v274 = vld [vmem:[#allocation8 + $0x110] sm:$0xff]
    %v275 = vld [vmem:[#allocation8 + $0x118] sm:$0xff]
    %v276 = vld [vmem:[#allocation8 + $0x120] sm:$0xff]
    %v277 = vld [vmem:[#allocation8 + $0x128] sm:$0xff]
    %v278 = vld [vmem:[#allocation8 + $0x130] sm:$0xff]
    %v279 = vld [vmem:[#allocation8 + $0x138] sm:$0xff]
    %v280 = vld [vmem:[#allocation8 + $0x140] sm:$0xff]
    %v281 = vld [vmem:[#allocation8 + $0x148] sm:$0xff]
    %v282 = vld [vmem:[#allocation8 + $0x150] sm:$0xff]
    %v283 = vld [vmem:[#allocation8 + $0x158] sm:$0xff]
    %v284 = vld [vmem:[#allocation8 + $0x160] sm:$0xff]
    %v285 = vld [vmem:[#allocation8 + $0x168] sm:$0xff]
    %v286 = vld [vmem:[#allocation8 + $0x170] sm:$0xff]
    %v287 = vld [vmem:[#allocation8 + $0x178] sm:$0xff]
    %v288 = vld [vmem:[#allocation8 + $0x180] sm:$0xff]
    %v289 = vld [vmem:[#allocation8 + $0x188] sm:$0xff]
    %v290 = vld [vmem:[#allocation8 + $0x190] sm:$0xff]
    %v291 = vld [vmem:[#allocation8 + $0x198] sm:$0xff]
    %v292 = vld [vmem:[#allocation8 + $0x1a0] sm:$0xff]
    %v293 = vld [vmem:[#allocation8 + $0x1a8] sm:$0xff]
    %v294 = vld [vmem:[#allocation8 + $0x1b0] sm:$0xff]
    %v295 = vld [vmem:[#allocation8 + $0x1b8] sm:$0xff]
    %v296 = vld [vmem:[#allocation8 + $0x1c0] sm:$0xff]
    %v297 = vld [vmem:[#allocation8 + $0x1c8] sm:$0xff]
    %v298 = vld [vmem:[#allocation8 + $0x1d0] sm:$0xff]
    %v299 = vld [vmem:[#allocation8 + $0x1d8] sm:$0xff]
    %v300 = vld [vmem:[#allocation8 + $0x1e0] sm:$0xff]
    %v301 = vld [vmem:[#allocation8 + $0x1e8] sm:$0xff]
    %v302 = vld [vmem:[#allocation8 + $0x1f0] sm:$0xff]
    %v303 = vld [vmem:[#allocation8 + $0x1f8] sm:$0xff]
    %v304 = vld [vmem:[%s4] sm:$0x3]
    %v306 = vperm.slane %v304, 0
    %v307 = vperm.slane %v304, 1
    %310 = vmatpush.msra.mxu0 %v270
    %311 = vmatpush.msra.mxu0 %v268
    %312 = vmatpush.msra.mxu0 %v266
    %313 = vmatpush.msra.mxu0 %v264
    %314 = vmatpush.msra.mxu0 %v262
    %315 = vmatpush.msra.mxu0 %v260
    %316 = vmatpush.msra.mxu0 %v258
    %317 = vmatpush.msra.mxu0 %v256
    %318 = vmatpush.msra.mxu0 %v254
    %319 = vmatpush.msra.mxu0 %v252
    %320 = vmatpush.msra.mxu0 %v250
    %321 = vmatpush.msra.mxu0 %v248
    %322 = vmatpush.msra.mxu0 %v246
    %323 = vmatpush.msra.mxu0 %v244
    %324 = vmatpush.msra.mxu0 %v242
    %325 = vmatpush.msra.mxu0 %v240
    %326 = vmatmul.f32.gmra.mxu0 %v236
    %v327 = vpop.f32.mrf.mxu0
    %v328 = vadd.f32 %v306, %v327
    %329 = vmatmul.f32.gmra.mxu0 %v238
    %v330 = vpop.f32.mrf.mxu0
    %v331 = vadd.f32 %v306, %v330
    %332 = vdwg.mxu0
    %333 = vmatpush.msra.mxu0 %v302
    %334 = vmatpush.msra.mxu0 %v300
    %335 = vmatpush.msra.mxu0 %v298
    %336 = vmatpush.msra.mxu0 %v296
    %337 = vmatpush.msra.mxu0 %v294
    %338 = vmatpush.msra.mxu0 %v292
    %339 = vmatpush.msra.mxu0 %v290
    %340 = vmatpush.msra.mxu0 %v288
    %341 = vmatpush.msra.mxu0 %v286
    %342 = vmatpush.msra.mxu0 %v284
    %343 = vmatpush.msra.mxu0 %v282
    %344 = vmatpush.msra.mxu0 %v280
    %345 = vmatpush.msra.mxu0 %v278
    %346 = vmatpush.msra.mxu0 %v276
    %347 = vmatpush.msra.mxu0 %v274
    %348 = vmatpush.msra.mxu0 %v272
    %349 = vmatmul.f32.gmra.mxu0 %v237
    %v350 = vpop.f32.mrf.mxu0
    %v351 = vadd.f32 %v328, %v350
    %352 = vmatmul.f32.gmra.mxu0 %v239
    %v353 = vpop.f32.mrf.mxu0
    %v354 = vadd.f32 %v331, %v353
    %355 = vdwg.mxu0
    %356 = vmatpush.msra.mxu0 %v271
    %357 = vmatpush.msra.mxu0 %v269
    %358 = vmatpush.msra.mxu0 %v267
    %359 = vmatpush.msra.mxu0 %v265
    %360 = vmatpush.msra.mxu0 %v263
    %361 = vmatpush.msra.mxu0 %v261
    %362 = vmatpush.msra.mxu0 %v259
    %363 = vmatpush.msra.mxu0 %v257
    %364 = vmatpush.msra.mxu0 %v255
    %365 = vmatpush.msra.mxu0 %v253
    %366 = vmatpush.msra.mxu0 %v251
    %367 = vmatpush.msra.mxu0 %v249
    %368 = vmatpush.msra.mxu0 %v247
    %369 = vmatpush.msra.mxu0 %v245
    %370 = vmatpush.msra.mxu0 %v243
    %371 = vmatpush.msra.mxu0 %v241
    %372 = vmatmul.f32.gmra.mxu0 %v236
    %v373 = vpop.f32.mrf.mxu0
    %v374 = vadd.f32 %v307, %v373
    %375 = vmatmul.f32.gmra.mxu0 %v238
    %v376 = vpop.f32.mrf.mxu0
    %v377 = vadd.f32 %v307, %v376
    %378 = vdwg.mxu0
    %379 = vmatpush.msra.mxu0 %v303
    %380 = vmatpush.msra.mxu0 %v301
    %381 = vmatpush.msra.mxu0 %v299
    %382 = vmatpush.msra.mxu0 %v297
    %383 = vmatpush.msra.mxu0 %v295
    %384 = vmatpush.msra.mxu0 %v293
    %385 = vmatpush.msra.mxu0 %v291
    %386 = vmatpush.msra.mxu0 %v289
    %387 = vmatpush.msra.mxu0 %v287
    %388 = vmatpush.msra.mxu0 %v285
    %389 = vmatpush.msra.mxu0 %v283
    %390 = vmatpush.msra.mxu0 %v281
    %391 = vmatpush.msra.mxu0 %v279
    %392 = vmatpush.msra.mxu0 %v277
    %393 = vmatpush.msra.mxu0 %v275
    %394 = vmatpush.msra.mxu0 %v273
    %395 = vmatmul.f32.gmra.mxu0 %v237
    %v396 = vpop.f32.mrf.mxu0
    %v397 = vadd.f32 %v374, %v396
    %398 = vmatmul.f32.gmra.mxu0 %v239
    %v399 = vpop.f32.mrf.mxu0
    %v400 = vadd.f32 %v377, %v399
    %401 = vdwg.mxu0
    %v402 = vmin.f32 %v351, 20.0
    %v403 = vmin.f32 %v397, 20.0
    %v404 = vmin.f32 %v354, 20.0
    %v405 = vmin.f32 %v400, 20.0
    %v406 = vmul.f32 %v402, 1.442695
    %v407 = vpow.pop %v406
    %v408 = vmul.f32 %v403, 1.442695
    %v409 = vpow.pop %v408
    %v410 = vmul.f32 %v404, 1.442695
    %v411 = vpow.pop %v410
    %v412 = vmul.f32 %v405, 1.442695
    %v413 = vpow.pop %v412
    %v414 = vadd.f32 %v407, 1.0
    %v415 = vadd.f32 %v409, 1.0
    %v416 = vadd.f32 %v411, 1.0
    %v417 = vadd.f32 %v413, 1.0
    %v418 = vmul.f32 %v414, %v414
    %v419 = vmul.f32 %v415, %v415
    %v420 = vmul.f32 %v416, %v416
    %v421 = vmul.f32 %v417, %v417
    %v422 = vsub.f32 %v418, 1.0
    %v423 = vsub.f32 %v419, 1.0
    %v424 = vsub.f32 %v420, 1.0
    %v425 = vsub.f32 %v421, 1.0
    %v426 = vmul.f32 %v351, %v422
    %v427 = vmul.f32 %v397, %v423
    %v428 = vmul.f32 %v354, %v424
    %v429 = vmul.f32 %v400, %v425
    %v430 = vadd.f32 %v418, 1.0
    %v431 = vadd.f32 %v419, 1.0
    %v432 = vadd.f32 %v420, 1.0
    %v433 = vadd.f32 %v421, 1.0
    %v434 = vrcp.pop %v430
    %v435 = vrcp.pop %v431
    %v436 = vrcp.pop %v432
    %v437 = vrcp.pop %v433
    %v438 = vmul.f32 %v426, %v434
    %v439 = vmul.f32 %v427, %v435
    %v440 = vmul.f32 %v428, %v436
    %v441 = vmul.f32 %v429, %v437
    %vm442 = vcmp.gt.f32.partialorder %v351, 20.0
    %vm443 = vcmp.gt.f32.partialorder %v397, 20.0
    %vm444 = vcmp.gt.f32.partialorder %v354, 20.0
    %vm445 = vcmp.gt.f32.partialorder %v400, 20.0
    %v446 = vsel %vm442, %v351, %v438
    %v447 = vsel %vm443, %v397, %v439
    %v448 = vsel %vm444, %v354, %v440
    %v449 = vsel %vm445, %v400, %v441
    %v450 = vld [vmem:[#allocation10] sm:$0xff]
    %v451 = vld [vmem:[#allocation10 + $0x8] sm:$0xff]
    %v452 = vld [vmem:[#allocation10 + $0x10] sm:$0xff]
    %v453 = vld [vmem:[#allocation10 + $0x18] sm:$0xff]
    %v454 = vld [vmem:[#allocation10 + $0x20] sm:$0xff]
    %v455 = vld [vmem:[#allocation10 + $0x28] sm:$0xff]
    %v456 = vld [vmem:[#allocation10 + $0x30] sm:$0xff]
    %v457 = vld [vmem:[#allocation10 + $0x38] sm:$0xff]
    %v458 = vld [vmem:[#allocation10 + $0x40] sm:$0xff]
    %v459 = vld [vmem:[#allocation10 + $0x48] sm:$0xff]
    %v460 = vld [vmem:[#allocation10 + $0x50] sm:$0xff]
    %v461 = vld [vmem:[#allocation10 + $0x58] sm:$0xff]
    %v462 = vld [vmem:[#allocation10 + $0x60] sm:$0xff]
    %v463 = vld [vmem:[#allocation10 + $0x68] sm:$0xff]
    %v464 = vld [vmem:[#allocation10 + $0x70] sm:$0xff]
    %v465 = vld [vmem:[#allocation10 + $0x78] sm:$0xff]
    %v466 = vld [vmem:[#allocation10 + $0x80] sm:$0xff]
    %v467 = vld [vmem:[#allocation10 + $0x88] sm:$0xff]
    %v468 = vld [vmem:[#allocation10 + $0x90] sm:$0xff]
    %v469 = vld [vmem:[#allocation10 + $0x98] sm:$0xff]
    %v470 = vld [vmem:[#allocation10 + $0xa0] sm:$0xff]
    %v471 = vld [vmem:[#allocation10 + $0xa8] sm:$0xff]
    %v472 = vld [vmem:[#allocation10 + $0xb0] sm:$0xff]
    %v473 = vld [vmem:[#allocation10 + $0xb8] sm:$0xff]
    %v474 = vld [vmem:[#allocation10 + $0xc0] sm:$0xff]
    %v475 = vld [vmem:[#allocation10 + $0xc8] sm:$0xff]
    %v476 = vld [vmem:[#allocation10 + $0xd0] sm:$0xff]
    %v477 = vld [vmem:[#allocation10 + $0xd8] sm:$0xff]
    %v478 = vld [vmem:[#allocation10 + $0xe0] sm:$0xff]
    %v479 = vld [vmem:[#allocation10 + $0xe8] sm:$0xff]
    %v480 = vld [vmem:[#allocation10 + $0xf0] sm:$0xff]
    %v481 = vld [vmem:[#allocation10 + $0xf8] sm:$0xff]
    %v482 = vld [vmem:[#allocation10 + $0x100] sm:$0xff]
    %v483 = vld [vmem:[#allocation10 + $0x108] sm:$0xff]
    %v484 = vld [vmem:[#allocation10 + $0x110] sm:$0xff]
    %v485 = vld [vmem:[#allocation10 + $0x118] sm:$0xff]
    %v486 = vld [vmem:[#allocation10 + $0x120] sm:$0xff]
    %v487 = vld [vmem:[#allocation10 + $0x128] sm:$0xff]
    %v488 = vld [vmem:[#allocation10 + $0x130] sm:$0xff]
    %v489 = vld [vmem:[#allocation10 + $0x138] sm:$0xff]
    %v490 = vld [vmem:[#allocation10 + $0x140] sm:$0xff]
    %v491 = vld [vmem:[#allocation10 + $0x148] sm:$0xff]
    %v492 = vld [vmem:[#allocation10 + $0x150] sm:$0xff]
    %v493 = vld [vmem:[#allocation10 + $0x158] sm:$0xff]
    %v494 = vld [vmem:[#allocation10 + $0x160] sm:$0xff]
    %v495 = vld [vmem:[#allocation10 + $0x168] sm:$0xff]
    %v496 = vld [vmem:[#allocation10 + $0x170] sm:$0xff]
    %v497 = vld [vmem:[#allocation10 + $0x178] sm:$0xff]
    %v498 = vld [vmem:[#allocation10 + $0x180] sm:$0xff]
    %v499 = vld [vmem:[#allocation10 + $0x188] sm:$0xff]
    %v500 = vld [vmem:[#allocation10 + $0x190] sm:$0xff]
    %v501 = vld [vmem:[#allocation10 + $0x198] sm:$0xff]
    %v502 = vld [vmem:[#allocation10 + $0x1a0] sm:$0xff]
    %v503 = vld [vmem:[#allocation10 + $0x1a8] sm:$0xff]
    %v504 = vld [vmem:[#allocation10 + $0x1b0] sm:$0xff]
    %v505 = vld [vmem:[#allocation10 + $0x1b8] sm:$0xff]
    %v506 = vld [vmem:[#allocation10 + $0x1c0] sm:$0xff]
    %v507 = vld [vmem:[#allocation10 + $0x1c8] sm:$0xff]
    %v508 = vld [vmem:[#allocation10 + $0x1d0] sm:$0xff]
    %v509 = vld [vmem:[#allocation10 + $0x1d8] sm:$0xff]
    %v510 = vld [vmem:[#allocation10 + $0x1e0] sm:$0xff]
    %v511 = vld [vmem:[#allocation10 + $0x1e8] sm:$0xff]
    %v512 = vld [vmem:[#allocation10 + $0x1f0] sm:$0xff]
    %v513 = vld [vmem:[#allocation10 + $0x1f8] sm:$0xff]
    %v514 = vld [vmem:[%s6] sm:$0x3]
    %v516 = vperm.slane %v514, 0
    %v517 = vperm.slane %v514, 1
    %520 = vmatpush.msra.mxu0 %v480
    %521 = vmatpush.msra.mxu0 %v478
    %522 = vmatpush.msra.mxu0 %v476
    %523 = vmatpush.msra.mxu0 %v474
    %524 = vmatpush.msra.mxu0 %v472
    %525 = vmatpush.msra.mxu0 %v470
    %526 = vmatpush.msra.mxu0 %v468
    %527 = vmatpush.msra.mxu0 %v466
    %528 = vmatpush.msra.mxu0 %v464
    %529 = vmatpush.msra.mxu0 %v462
    %530 = vmatpush.msra.mxu0 %v460
    %531 = vmatpush.msra.mxu0 %v458
    %532 = vmatpush.msra.mxu0 %v456
    %533 = vmatpush.msra.mxu0 %v454
    %534 = vmatpush.msra.mxu0 %v452
    %535 = vmatpush.msra.mxu0 %v450
    %536 = vmatmul.f32.gmra.mxu0 %v446
    %v537 = vpop.f32.mrf.mxu0
    %v538 = vadd.f32 %v516, %v537
    %539 = vmatmul.f32.gmra.mxu0 %v448
    %v540 = vpop.f32.mrf.mxu0
    %v541 = vadd.f32 %v516, %v540
    %542 = vdwg.mxu0
    %543 = vmatpush.msra.mxu0 %v512
    %544 = vmatpush.msra.mxu0 %v510
    %545 = vmatpush.msra.mxu0 %v508
    %546 = vmatpush.msra.mxu0 %v506
    %547 = vmatpush.msra.mxu0 %v504
    %548 = vmatpush.msra.mxu0 %v502
    %549 = vmatpush.msra.mxu0 %v500
    %550 = vmatpush.msra.mxu0 %v498
    %551 = vmatpush.msra.mxu0 %v496
    %552 = vmatpush.msra.mxu0 %v494
    %553 = vmatpush.msra.mxu0 %v492
    %554 = vmatpush.msra.mxu0 %v490
    %555 = vmatpush.msra.mxu0 %v488
    %556 = vmatpush.msra.mxu0 %v486
    %557 = vmatpush.msra.mxu0 %v484
    %558 = vmatpush.msra.mxu0 %v482
    %559 = vmatmul.f32.gmra.mxu0 %v447
    %v560 = vpop.f32.mrf.mxu0
    %v561 = vadd.f32 %v538, %v560
    %562 = vmatmul.f32.gmra.mxu0 %v449
    %v563 = vpop.f32.mrf.mxu0
    %v564 = vadd.f32 %v541, %v563
    %565 = vdwg.mxu0
    %566 = vmatpush.msra.mxu0 %v481
    %567 = vmatpush.msra.mxu0 %v479
    %568 = vmatpush.msra.mxu0 %v477
    %569 = vmatpush.msra.mxu0 %v475
    %570 = vmatpush.msra.mxu0 %v473
    %571 = vmatpush.msra.mxu0 %v471
    %572 = vmatpush.msra.mxu0 %v469
    %573 = vmatpush.msra.mxu0 %v467
    %574 = vmatpush.msra.mxu0 %v465
    %575 = vmatpush.msra.mxu0 %v463
    %576 = vmatpush.msra.mxu0 %v461
    %577 = vmatpush.msra.mxu0 %v459
    %578 = vmatpush.msra.mxu0 %v457
    %579 = vmatpush.msra.mxu0 %v455
    %580 = vmatpush.msra.mxu0 %v453
    %581 = vmatpush.msra.mxu0 %v451
    %582 = vmatmul.f32.gmra.mxu0 %v446
    %v583 = vpop.f32.mrf.mxu0
    %v584 = vadd.f32 %v517, %v583
    %585 = vmatmul.f32.gmra.mxu0 %v448
    %v586 = vpop.f32.mrf.mxu0
    %v587 = vadd.f32 %v517, %v586
    %588 = vdwg.mxu0
    %589 = vmatpush.msra.mxu0 %v513
    %590 = vmatpush.msra.mxu0 %v511
    %591 = vmatpush.msra.mxu0 %v509
    %592 = vmatpush.msra.mxu0 %v507
    %593 = vmatpush.msra.mxu0 %v505
    %594 = vmatpush.msra.mxu0 %v503
    %595 = vmatpush.msra.mxu0 %v501
    %596 = vmatpush.msra.mxu0 %v499
    %597 = vmatpush.msra.mxu0 %v497
    %598 = vmatpush.msra.mxu0 %v495
    %599 = vmatpush.msra.mxu0 %v493
    %600 = vmatpush.msra.mxu0 %v491
    %601 = vmatpush.msra.mxu0 %v489
    %602 = vmatpush.msra.mxu0 %v487
    %603 = vmatpush.msra.mxu0 %v485
    %604 = vmatpush.msra.mxu0 %v483
    %605 = vmatmul.f32.gmra.mxu0 %v447
    %v606 = vpop.f32.mrf.mxu0
    %v607 = vadd.f32 %v584, %v606
    %608 = vmatmul.f32.gmra.mxu0 %v449
    %v609 = vpop.f32.mrf.mxu0
    %v610 = vadd.f32 %v587, %v609
    %611 = vdwg.mxu0
    %v612 = vmin.f32 %v561, 20.0
    %v613 = vmin.f32 %v607, 20.0
    %v614 = vmin.f32 %v564, 20.0
    %v615 = vmin.f32 %v610, 20.0
    %v616 = vmul.f32 %v612, 1.442695
    %v617 = vpow.pop %v616
    %v618 = vmul.f32 %v613, 1.442695
    %v619 = vpow.pop %v618
    %v620 = vmul.f32 %v614, 1.442695
    %v621 = vpow.pop %v620
    %v622 = vmul.f32 %v615, 1.442695
    %v623 = vpow.pop %v622
    %v624 = vadd.f32 %v617, 1.0
    %v625 = vadd.f32 %v619, 1.0
    %v626 = vadd.f32 %v621, 1.0
    %v627 = vadd.f32 %v623, 1.0
    %v628 = vmul.f32 %v624, %v624
    %v629 = vmul.f32 %v625, %v625
    %v630 = vmul.f32 %v626, %v626
    %v631 = vmul.f32 %v627, %v627
    %v632 = vsub.f32 %v628, 1.0
    %v633 = vsub.f32 %v629, 1.0
    %v634 = vsub.f32 %v630, 1.0
    %v635 = vsub.f32 %v631, 1.0
    %v636 = vmul.f32 %v561, %v632
    %v637 = vmul.f32 %v607, %v633
    %v638 = vmul.f32 %v564, %v634
    %v639 = vmul.f32 %v610, %v635
    %v640 = vadd.f32 %v628, 1.0
    %v641 = vadd.f32 %v629, 1.0
    %v642 = vadd.f32 %v630, 1.0
    %v643 = vadd.f32 %v631, 1.0
    %v644 = vrcp.pop %v640
    %v645 = vrcp.pop %v641
    %v646 = vrcp.pop %v642
    %v647 = vrcp.pop %v643
    %v648 = vmul.f32 %v636, %v644
    %v649 = vmul.f32 %v637, %v645
    %v650 = vmul.f32 %v638, %v646
    %v651 = vmul.f32 %v639, %v647
    %vm652 = vcmp.gt.f32.partialorder %v561, 20.0
    %vm653 = vcmp.gt.f32.partialorder %v607, 20.0
    %vm654 = vcmp.gt.f32.partialorder %v564, 20.0
    %vm655 = vcmp.gt.f32.partialorder %v610, 20.0
    %v656 = vsel %vm652, %v561, %v648
    %v657 = vsel %vm653, %v607, %v649
    %v658 = vsel %vm654, %v564, %v650
    %v659 = vsel %vm655, %v610, %v651
    %v660 = vld [vmem:[#allocation11] sm:$0xff]
    %v661 = vld [vmem:[#allocation11 + $0x8] sm:$0xff]
    %v662 = vld [vmem:[#allocation11 + $0x10] sm:$0xff]
    %v663 = vld [vmem:[#allocation11 + $0x18] sm:$0xff]
    %v664 = vld [vmem:[#allocation11 + $0x20] sm:$0xff]
    %v665 = vld [vmem:[#allocation11 + $0x28] sm:$0xff]
    %v666 = vld [vmem:[#allocation11 + $0x30] sm:$0xff]
    %v667 = vld [vmem:[#allocation11 + $0x38] sm:$0xff]
    %v668 = vld [vmem:[#allocation11 + $0x40] sm:$0xff]
    %v669 = vld [vmem:[#allocation11 + $0x48] sm:$0xff]
    %v670 = vld [vmem:[#allocation11 + $0x50] sm:$0xff]
    %v671 = vld [vmem:[#allocation11 + $0x58] sm:$0xff]
    %v672 = vld [vmem:[#allocation11 + $0x60] sm:$0xff]
    %v673 = vld [vmem:[#allocation11 + $0x68] sm:$0xff]
    %v674 = vld [vmem:[#allocation11 + $0x70] sm:$0xff]
    %v675 = vld [vmem:[#allocation11 + $0x78] sm:$0xff]
    %v676 = vld [vmem:[#allocation11 + $0x80] sm:$0xff]
    %v677 = vld [vmem:[#allocation11 + $0x88] sm:$0xff]
    %v678 = vld [vmem:[#allocation11 + $0x90] sm:$0xff]
    %v679 = vld [vmem:[#allocation11 + $0x98] sm:$0xff]
    %v680 = vld [vmem:[#allocation11 + $0xa0] sm:$0xff]
    %v681 = vld [vmem:[#allocation11 + $0xa8] sm:$0xff]
    %v682 = vld [vmem:[#allocation11 + $0xb0] sm:$0xff]
    %v683 = vld [vmem:[#allocation11 + $0xb8] sm:$0xff]
    %v684 = vld [vmem:[#allocation11 + $0xc0] sm:$0xff]
    %v685 = vld [vmem:[#allocation11 + $0xc8] sm:$0xff]
    %v686 = vld [vmem:[#allocation11 + $0xd0] sm:$0xff]
    %v687 = vld [vmem:[#allocation11 + $0xd8] sm:$0xff]
    %v688 = vld [vmem:[#allocation11 + $0xe0] sm:$0xff]
    %v689 = vld [vmem:[#allocation11 + $0xe8] sm:$0xff]
    %v690 = vld [vmem:[#allocation11 + $0xf0] sm:$0xff]
    %v691 = vld [vmem:[#allocation11 + $0xf8] sm:$0xff]
    %v692 = vld [vmem:[%s8] sm:$0x1]
    %v694 = vperm.slane %v692, 0
    %696 = vmatpush.msra.mxu0 %v675
    %697 = vmatpush.msra.mxu0 %v674
    %698 = vmatpush.msra.mxu0 %v673
    %699 = vmatpush.msra.mxu0 %v672
    %700 = vmatpush.msra.mxu0 %v671
    %701 = vmatpush.msra.mxu0 %v670
    %702 = vmatpush.msra.mxu0 %v669
    %703 = vmatpush.msra.mxu0 %v668
    %704 = vmatpush.msra.mxu0 %v667
    %705 = vmatpush.msra.mxu0 %v666
    %706 = vmatpush.msra.mxu0 %v665
    %707 = vmatpush.msra.mxu0 %v664
    %708 = vmatpush.msra.mxu0 %v663
    %709 = vmatpush.msra.mxu0 %v662
    %710 = vmatpush.msra.mxu0 %v661
    %711 = vmatpush.msra.mxu0 %v660
    %712 = vmatmul.f32.gmra.mxu0 %v656
    %v713 = vpop.f32.mrf.mxu0
    %v714 = vadd.f32 %v694, %v713
    %715 = vmatmul.f32.gmra.mxu0 %v658
    %v716 = vpop.f32.mrf.mxu0
    %v717 = vadd.f32 %v694, %v716
    %718 = vdwg.mxu0
    %719 = vmatpush.msra.mxu0 %v691
    %720 = vmatpush.msra.mxu0 %v690
    %721 = vmatpush.msra.mxu0 %v689
    %722 = vmatpush.msra.mxu0 %v688
    %723 = vmatpush.msra.mxu0 %v687
    %724 = vmatpush.msra.mxu0 %v686
    %725 = vmatpush.msra.mxu0 %v685
    %726 = vmatpush.msra.mxu0 %v684
    %727 = vmatpush.msra.mxu0 %v683
    %728 = vmatpush.msra.mxu0 %v682
    %729 = vmatpush.msra.mxu0 %v681
    %730 = vmatpush.msra.mxu0 %v680
    %731 = vmatpush.msra.mxu0 %v679
    %732 = vmatpush.msra.mxu0 %v678
    %733 = vmatpush.msra.mxu0 %v677
    %734 = vmatpush.msra.mxu0 %v676
    %735 = vmatmul.f32.gmra.mxu0 %v657
    %v736 = vpop.f32.mrf.mxu0
    %v737 = vadd.f32 %v714, %v736
    %738 = vmatmul.f32.gmra.mxu0 %v659
    %v739 = vpop.f32.mrf.mxu0
    %v740 = vadd.f32 %v717, %v739
    %741 = vdwg.mxu0
    %742 = vst [vmem:[#allocation13] sm:$0xff] %v737
    %743 = vst [vmem:[#allocation13 + $0x8] sm:$0xff] %v740
    // Predicated region
    $region62: #{tpu_custom_call.1} parent=1 // pred_check
      _
    $region63: #{tpu_custom_call.1} parent=1 // pred_check_branch
      %745 = sbr.rel (0) target = $region65
    $region64: #{tpu_custom_call.1} parent=1 // pred_region
      %747 = vsyncadd [#allocation4], 0
      %s748 = sshll.u32 [#allocation13], 4
      %s749 = int_to_ptr.vmem [resolvable:$true] %s748
      %s750 = sshll.u32 %s9, 4
      %s751 = int_to_ptr.hbm [resolvable:$true] %s750
      %756 = dma.vmem_to_hbm [thread:$0]  %s749, 256, %s751, [#allocation4], 128, 128, 8
    $region65: #{tpu_custom_call.1} parent=1 // pred_fallthru
      _
    // Predicated region
    $region66: #{tpu_custom_call.1} parent=1 // pred_check
      _
    $region67: #{tpu_custom_call.1} parent=1 // pred_check_branch
      %758 = sbr.rel (0) target = $region69
    $region68: #{tpu_custom_call.1} parent=1 // pred_region
      %760 = dma.done [#allocation4], 256
    $region69: #{tpu_custom_call.1} parent=1 // pred_fallthru
      _
    %761 = vsyncpa [#allocation3], 1
    %762 = vsyncpa [#allocation6], 1
    %763 = vsyncpa [#allocation9], 1
    %764 = vsyncpa [#allocation12], 1
    %765 = vsyncpa [#allocation4], 1

</llo_original>
